<compile_context>
chip_gen: v7x
topology: tpu7x:2x2x1
jax: 0.10.0
libtpu: 0.0.40
codegen_flags: <defaults>
</compile_context>

<pallas_src>
import jax
import jax.numpy as jnp
from jax.experimental import pallas as pl
from jax.experimental.pallas import tpu as pltpu


# ----------------------------- helpers -------------------------------------
def _round_up(x, m):
    return ((x + m - 1) // m) * m


def _vmem_capacity_bytes():
    try:
        return int(pltpu.get_tpu_info().vmem_capacity_bytes)
    except Exception:
        return 64 * 1024 * 1024  # v7x-safe fallback


# ---------------- path 1: resident table, chunked one-hot MXU ---------------
_V_CHUNK = 512  # vocab-axis contraction chunk (multiple of 8 / 128-friendly)


def _onehot_matmul_kernel(ids_ref, table_ref, out_ref):
    """ids_ref: [rows, 1] int32 (VMEM); table_ref: [V, D]; out_ref: [rows, D]."""
    ids = ids_ref[...]                                     # [rows, 1]
    rows = ids.shape[0]
    V, D = table_ref.shape
    acc = jnp.zeros((rows, D), jnp.float32)
    v0 = 0
    while v0 < V:                                          # static, unrolled at trace time
        cv = min(_V_CHUNK, V - v0)
        col = jax.lax.broadcasted_iota(jnp.int32, (rows, cv), 1) + v0
        # 0/1 selector is exact in any float dtype (also works for bf16 tables).
        onehot = (col == ids).astype(table_ref.dtype)
        acc = acc + jnp.dot(onehot, table_ref[v0:v0 + cv, :],
                            preferred_element_type=jnp.float32)
        v0 += cv
    out_ref[...] = acc.astype(out_ref.dtype)
    # dropout(p=0.0) is the identity in eval mode -> nothing else to do.


def _embed_onehot_matmul(ids_flat, table, *, block_rows, vmem_cap):
    N = ids_flat.shape[0]
    V, D = table.shape
    itemsize = jnp.dtype(table.dtype).itemsize

    if block_rows is None:
        if N <= 8:
            block_rows = N                       # single step; tiny problem
        else:
            # At least 2 grid steps so v7x's two TensorCores both get work;
            # cap the tile so out blocks + one-hot chunk stay small.
            block_rows = min(256, _round_up((N + 1) // 2, 8))

    Np = _round_up(N, block_rows)
    if Np != N:
        ids_flat = jnp.pad(ids_flat, (0, Np - N))  # pad ids gather row 0; sliced off below
    ids2d = ids_flat.reshape(Np, 1)
    grid = (Np // block_rows,)

    table_bytes = V * D * itemsize
    v_chunk = min(_V_CHUNK, V)
    needed = (
        table_bytes                              # resident table (single-buffered)
        + 2 * block_rows * D * itemsize          # double-buffered output blocks
        + 2 * block_rows * 128 * 4               # lane-padded ids blocks (accepted knowingly)
        + block_rows * v_chunk * 4               # one-hot chunk
        + block_rows * D * 4                     # f32 accumulator
    )
    vmem_limit = int(min(max(needed + (4 << 20), 32 << 20), vmem_cap * 3 // 4))

    out = pl.pallas_call(
        _onehot_matmul_kernel,
        out_shape=jax.ShapeDtypeStruct((Np, D), table.dtype),
        grid_spec=pltpu.PrefetchScalarGridSpec(
            num_scalar_prefetch=0,
            grid=grid,
            in_specs=[
                # Token ids for this row block.
                pl.BlockSpec((block_rows, 1), lambda i: (i, 0)),
                # Embedding table: constant block index -> fetched once and
                # resident across grid steps; single-buffer it (Buffered(1)).
                pl.BlockSpec((V, D), lambda i: (0, 0),
                             pipeline_mode=pl.Buffered(1)),
            ],
            out_specs=pl.BlockSpec((block_rows, D), lambda i: (i, 0)),
        ),
        compiler_params=pltpu.CompilerParams(
            dimension_semantics=("parallel",),
            vmem_limit_bytes=vmem_limit,
        ),
        cost_estimate=pl.CostEstimate(
            flops=2 * Np * V * D,
            transcendentals=0,
            bytes_accessed=table_bytes + Np * D * itemsize + Np * 4,
        ),
    )(ids2d, table)
    return out[:N]


# ---------------- path 2: scalar-prefetch DMA row gather (large vocab) ------
def _row_gather_kernel(ids_ref, row_ref, out_ref):
    # ids_ref: SMEM int32[N] scalar-prefetch array; consumed by the index_maps.
    del ids_ref
    out_ref[...] = row_ref[...]


def _embed_dma_gather(ids_flat, table):
    N = ids_flat.shape[0]
    V, D = table.shape
    itemsize = jnp.dtype(table.dtype).itemsize
    table3 = table.reshape(V, 1, D)  # free reshape; (1, D) trailing dims for clean tiling

    out = pl.pallas_call(
        _row_gather_kernel,
        out_shape=jax.ShapeDtypeStruct((N, 1, D), table.dtype),
        grid_spec=pltpu.PrefetchScalarGridSpec(
            num_scalar_prefetch=1,
            grid=(N,),
            in_specs=[
                # Data-dependent row fetch straight from HBM: only the N rows
                # actually used are read (N*D bytes instead of the whole table).
                pl.BlockSpec((1, 1, D), lambda i, ids: (ids[i], 0, 0)),
            ],
            out_specs=pl.BlockSpec((1, 1, D), lambda i, ids: (i, 0, 0)),
        ),
        compiler_params=pltpu.CompilerParams(
            dimension_semantics=("arbitrary",),
        ),
        cost_estimate=pl.CostEstimate(
            flops=0,
            transcendentals=0,
            bytes_accessed=2 * N * D * itemsize + N * 4,
        ),
    )(ids_flat, table3)
    # TODO(synk): batch several rows per grid step (manual DMA gather) to
    # amortize the ~0.35 us per-step overhead for very long sequences.
    return out.reshape(N, D)


# ----------------------------- public wrapper -------------------------------
def token_embedding(x, table, *, block_rows=None, max_resident_table_bytes=None):
    """x: int [B, T] token ids; table: [V, D]. Returns [B, T, D] = table[x] (dropout p=0)."""
    B, T = x.shape
    V, D = table.shape
    N = B * T
    ids_flat = x.reshape(N).astype(jnp.int32)

    vmem_cap = _vmem_capacity_bytes()
    if max_resident_table_bytes is None:
        # Keep the resident table well under the per-generation VMEM capacity
        # (64 MiB on v7x, 128 MiB on v5e/v6e), leaving room for the other buffers.
        max_resident_table_bytes = vmem_cap // 4
    table_bytes = V * D * jnp.dtype(table.dtype).itemsize

    if table_bytes > max_resident_table_bytes:
        out = _embed_dma_gather(ids_flat, table)
    else:
        out = _embed_onehot_matmul(ids_flat, table,
                                   block_rows=block_rows, vmem_cap=vmem_cap)
    return out.reshape(B, T, D)


# ---------------- pure-JAX reference (nn.Embedding + Dropout(p=0)) ----------
def reference(x, table):
    return jnp.take(table, x, axis=0)


# ----------------------------------- main ------------------------------------
if __name__ == "__main__":
    # Small shapes consistent with the module's forward:
    #   batch=2, seq=8, vocab_size=512, d_model=128 (lane-dense output).
    B, T = 2, 8
    VOCAB, D_MODEL = 512, 128

    key = jax.random.PRNGKey(0)
    k_tab, k_ids = jax.random.split(key)
    table = 0.02 * jax.random.normal(k_tab, (VOCAB, D_MODEL), dtype=jnp.float32)
    x = jax.random.randint(k_ids, (B, T), 0, VOCAB, dtype=jnp.int32)

    ref = reference(x, table)

    # Primary path: resident-table chunked one-hot MXU matmul.
    out = jax.block_until_ready(token_embedding(x, table))
    assert out.shape == (B, T, D_MODEL)
    assert bool(jnp.allclose(out, ref, atol=1e-5, rtol=1e-5)), (
        f"matmul path max abs diff {float(jnp.max(jnp.abs(out - ref)))}"
    )

    # Large-vocab path: scalar-prefetch DMA row gather (forced here for coverage).
    out_g = jax.block_until_ready(
        token_embedding(x, table, max_resident_table_bytes=0))
    assert out_g.shape == (B, T, D_MODEL)
    assert bool(jnp.array_equal(out_g, ref)), "DMA-gather path mismatch"

    print("KERNEL_OK")
</pallas_src>

<mosaic_0001>
module attributes {stable_mosaic.version = 11 : i64} {
  func.func @_onehot_matmul_kernel(%arg0: i32, %arg1: memref<8x1xi32, #tpu.memory_space<vmem>>, %arg2: memref<512x128xf32, #tpu.memory_space<vmem>>, %arg3: memref<8x128xf32, #tpu.memory_space<vmem>>) attributes {dimension_semantics = [#tpu.dimension_semantics<parallel>], iteration_bounds = array<i64: 2>, scalar_prefetch = 0 : i64, scratch_operands = 0 : i64, tpu.core_type = #tpu.core_type<tc>, window_params = [{transform_indices = @transform_0, window_bounds = array<i64: 8, 1>}, {pipeline_mode = #tpu.pipeline_mode<synchronous>, transform_indices = @transform_1, window_bounds = array<i64: 512, 128>}, {transform_indices = @transform_2, window_bounds = array<i64: 8, 128>}]} {
    %c0 = arith.constant 0 : index
    %c0_0 = arith.constant 0 : index
    %0 = vector.load %arg1[%c0, %c0_0] : memref<8x1xi32, #tpu.memory_space<vmem>>, vector<8x1xi32>
    %cst = arith.constant 0.000000e+00 : f32
    %1 = vector.broadcast %cst : f32 to vector<8x128xf32>
    %2 = tpu.iota {dimensions = array<i32: 1>} : vector<8x512xi32>
    %c0_i32 = arith.constant 0 : i32
    %3 = vector.broadcast %c0_i32 : i32 to vector<8x512xi32>
    %4 = arith.addi %2, %3 : vector<8x512xi32>
    %5 = vector.broadcast %0 : vector<8x1xi32> to vector<8x512xi32>
    %6 = arith.cmpi eq, %4, %5 : vector<8x512xi32>
    %7 = arith.extui %6 : vector<8x512xi1> to vector<8x512xi32>
    %8 = arith.sitofp %7 : vector<8x512xi32> to vector<8x512xf32>
    %c0_1 = arith.constant 0 : index
    %c0_2 = arith.constant 0 : index
    %9 = vector.load %arg2[%c0_1, %c0_2] : memref<512x128xf32, #tpu.memory_space<vmem>>, vector<512x128xf32>
    %cst_3 = arith.constant dense<0.000000e+00> : vector<8x128xf32>
    %10 = tpu.matmul %8, %9, %cst_3 {dimension_numbers = #tpu.dot_dimension_numbers<[1], [0], [0], [1], [0, 0, 1, 1], [], []>} : vector<8x512xf32>, vector<512x128xf32>, vector<8x128xf32> -> vector<8x128xf32>
    %11 = arith.addf %1, %10 : vector<8x128xf32>
    %c0_4 = arith.constant 0 : index
    %c0_5 = arith.constant 0 : index
    %12 = vector.load %arg3[%c0_4, %c0_5] : memref<8x128xf32, #tpu.memory_space<vmem>>, vector<8x128xf32>
    tpu.vector_store %arg3[%c0_4, %c0_5], %11 {strides = array<i32>} : memref<8x128xf32, #tpu.memory_space<vmem>>, vector<8x128xf32>,
    return
  }
  func.func @transform_0(%arg0: i32) -> (i32, i32) {
    %c0_i32 = arith.constant 0 : i32
    %c0_i32_0 = arith.constant 0 : i32
    return %arg0, %c0_i32 : i32, i32
  }
  func.func @transform_1(%arg0: i32) -> (i32, i32) {
    %c0_i32 = arith.constant 0 : i32
    %c0_i32_0 = arith.constant 0 : i32
    %c0_i32_1 = arith.constant 0 : i32
    return %c0_i32, %c0_i32_0 : i32, i32
  }
  func.func @transform_2(%arg0: i32) -> (i32, i32) {
    %c0_i32 = arith.constant 0 : i32
    %c0_i32_0 = arith.constant 0 : i32
    return %arg0, %c0_i32 : i32, i32
  }
}

</mosaic_0001>

<llo_original>
// kernel: tpu_custom_call.1
$region0: #{tpu_custom_call.1}
  #allocation0 [shape = 'u32[]', space=smem, size = 0x4, offset = 0x4, fixed_abs, tag = 'smem constant byte address 0x4 - core index']
  #allocation1 [shape = 'u32[144,128]{1,0:T(1,128)}', space=vmem, size = 0x12000, scoped, tag = 'internal scratch']
  %s0 = inlined_call_operand.vmem [shape: s32[16,1], index: 0, kind: input, shape index: {}]
  %s1 = inlined_call_operand.hbm [shape: f32[512,128], index: 1, kind: input, shape index: {}]
  %s2 = inlined_call_operand.hbm [shape: f32[16,128], index: 2, kind: output, shape index: {}]
  %s3 = sld [smem:[#allocation0]]
  $region45: #{tpu_custom_call.1} parent=0
    _
  %s5 = ssub.s32 1, %s3
  %s6 = scalar_select 0, %s5, %s3
  $region1: #{tpu_custom_call.1} parent=0
    #allocation2 [shape = 'u8[262144]{0}', space=vmem, size = 0x40000, scoped, tag = 'input window, operand 1, single buffered']
    #allocation3 [shape = 's32[2]{0}', space=sflag, size = 0x8, scoped, tag = 'scoped memory for tpu_custom_call.1']
    #allocation4 [shape = 's32[2]{0}', space=sflag, size = 0x8, scoped, tag = 'scoped memory for tpu_custom_call.1']
    #allocation5 [shape = 'u8[8192]{0}', space=vmem, size = 0x2000, scoped, tag = 'output window, operand 0']
    %7 = vsyncpa [#allocation3], 0
    %8 = vsyncpa [#allocation4], 0
    %s9 = scalar_lea.sflag [#allocation4], 1
    %10 = vsyncpa %s9, 0
    loop: start=0, step=1, limit=4
    $region2: #{tpu_custom_call.1} parent=1 // loop_pre_header
      _
    $region3: #{tpu_custom_call.1} parent=1 // loop_header
      %s12 = sphi 0, %s16
      %p13 = scmp.ge.s32.totalorder %s12, 4
      %s22 = sphi 0, %s24
      %s25 = sphi 0, %s22
      %s26 = sphi 0, %s25
      %s42 = sphi 0, %s26
      %s46 = sphi 0, %s46
      %s48 = sphi 0, %s46
      %s49 = sphi 0, %s48
      %s63 = sphi 0, %s49
      %s69 = sphi 0, %s71
      %s72 = sphi 0, %s69
      %s73 = sphi 0, %s72
      %s89 = sphi 0, %s73
    $region4: #{tpu_custom_call.1} parent=1 // loop_header_branch
      %15 = sbr.rel (%p13) target = $region8
    $region5: #{tpu_custom_call.1} parent=1 // loop_body
      %s17 = ssub.s32 %s12, 1
      %s18 = ssub.s32 %s12, 2
      %s19 = sadd.s32 %s12, 1
      %s20 = ssub.s32 %s12, %s19
      %p21 = scmp.eq.s32.totalorder %s20, 0
      %s23 = sadd.s32 %s22, 1
      %s24 = scalar_select %p21, %s22, %s23
      %p27 = pneg %p21
      %p28 = scmp.eq.s32.totalorder %s12, 1
      %p29 = por %p27, %p28
      %p30 = scmp.ne.s32.totalorder %s22, %s25
      %p31 = scmp.eq.s32.totalorder %s12, 0
      %p32 = por %p30, %p31
      %p33 = scmp.ne.s32.totalorder %s22, %s25
      %p34 = scmp.eq.s32.totalorder %s17, 1
      %p35 = por %p33, %p34
      %p36 = scmp.ne.s32.totalorder %s25, %s26
      %p37 = scmp.eq.s32.totalorder %s17, 0
      %p38 = por %p36, %p37
      %p39 = scmp.ne.s32.totalorder %s25, %s26
      %p40 = scmp.eq.s32.totalorder %s18, 1
      %p41 = por %p39, %p40
      %p43 = scmp.ne.s32.totalorder %s26, %s42
      %p44 = scmp.eq.s32.totalorder %s18, 0
      %p45 = por %p43, %p44
      %s47 = sadd.s32 %s46, 1
      %p50 = scmp.eq.s32.totalorder %s12, 1
      %p51 = scmp.ne.s32.totalorder %s46, %s48
      %p52 = scmp.eq.s32.totalorder %s12, 0
      %p53 = por %p51, %p52
      %p54 = scmp.ne.s32.totalorder %s46, %s48
      %p55 = scmp.eq.s32.totalorder %s17, 1
      %p56 = por %p54, %p55
      %p57 = scmp.ne.s32.totalorder %s48, %s49
      %p58 = scmp.eq.s32.totalorder %s17, 0
      %p59 = por %p57, %p58
      %p60 = scmp.ne.s32.totalorder %s48, %s49
      %p61 = scmp.eq.s32.totalorder %s18, 1
      %p62 = por %p60, %p61
      %p64 = scmp.ne.s32.totalorder %s49, %s63
      %p65 = scmp.eq.s32.totalorder %s18, 0
      %p66 = por %p64, %p65
      %s67 = ssub.s32 %s12, %s19
      %p68 = scmp.eq.s32.totalorder %s67, 0
      %s70 = sadd.s32 %s69, 1
      %s71 = scalar_select %p68, %s69, %s70
      %p74 = pneg %p68
      %p75 = scmp.eq.s32.totalorder %s12, 1
      %p76 = por %p74, %p75
      %p77 = scmp.ne.s32.totalorder %s69, %s72
      %p78 = scmp.eq.s32.totalorder %s12, 0
      %p79 = por %p77, %p78
      %p80 = scmp.ne.s32.totalorder %s69, %s72
      %p81 = scmp.eq.s32.totalorder %s17, 1
      %p82 = por %p80, %p81
      %p83 = scmp.ne.s32.totalorder %s72, %s73
      %p84 = scmp.eq.s32.totalorder %s17, 0
      %p85 = por %p83, %p84
      %p86 = scmp.ne.s32.totalorder %s72, %s73
      %p87 = scmp.eq.s32.totalorder %s18, 1
      %p88 = por %p86, %p87
      %p90 = scmp.ne.s32.totalorder %s73, %s89
      %p91 = scmp.eq.s32.totalorder %s18, 0
      %p92 = por %p90, %p91
      %p93 = scmp.le.s32.totalorder 1, %s12
      %p94 = scmp.lt.s32.totalorder %s12, 3
      %p95 = pnand %p93, %p94
      %p96 = pneg %p95
      // Predicated region
      $region9: #{tpu_custom_call.1} parent=5 // pred_check
        _
      $region10: #{tpu_custom_call.1} parent=5 // pred_check_branch
        %98 = sbr.rel (%p95) target = $region12
      $region11: #{tpu_custom_call.1} parent=5 // pred_region
        %s99 = ssub.s32 %s12, 1
        // Predicated region
        $region13: #{tpu_custom_call.1} parent=11 // pred_check
          %p100 = pneg %p59
        $region14: #{tpu_custom_call.1} parent=11 // pred_check_branch
          %102 = sbr.rel (%p100) target = $region16
        $region15: #{tpu_custom_call.1} parent=11 // pred_region
          %s104 = ssub.s32 8192, 8192
          %105 = vsyncadd [#allocation3], %s104
          %s106 = sshll.u32 [#allocation2], 4
          %s107 = int_to_ptr.vmem [resolvable:$true] %s106
          %112 = dma.hbm_to_vmem [thread:$0]  %s1, 8192, %s107, [#allocation3], 128, 128, 8
        $region16: #{tpu_custom_call.1} parent=11 // pred_fallthru
          _
      $region12: #{tpu_custom_call.1} parent=5 // pred_fallthru
        _
      %p113 = scmp.lt.s32.totalorder %s12, 2
      // Predicated region
      $region17: #{tpu_custom_call.1} parent=5 // pred_check
        %p114 = pneg %p113
      $region18: #{tpu_custom_call.1} parent=5 // pred_check_branch
        %116 = sbr.rel (%p114) target = $region20
      $region19: #{tpu_custom_call.1} parent=5 // pred_region
        // Predicated region
        $region21: #{tpu_custom_call.1} parent=19 // pred_check
          %p117 = pneg %p32
        $region22: #{tpu_custom_call.1} parent=19 // pred_check_branch
          %119 = sbr.rel (%p117) target = $region24
        $region23: #{tpu_custom_call.1} parent=19 // pred_region
          %p120 = scmp.lt.s32.totalorder %s12, 1
          %s121 = scalar_select %p120, %s12, 1
          %s122 = smul.addr %s121, 8
          %s123 = scalar_lea.vmem %s0, %s122
        $region24: #{tpu_custom_call.1} parent=19 // pred_fallthru
          _
      $region20: #{tpu_custom_call.1} parent=5 // pred_fallthru
        _
      %p124 = scmp.le.s32.totalorder 1, %s12
      %p125 = scmp.lt.s32.totalorder %s12, 3
      %p126 = pnand %p124, %p125
      %p127 = pneg %p126
      // Predicated region
      $region25: #{tpu_custom_call.1} parent=5 // pred_check
        _
      $region26: #{tpu_custom_call.1} parent=5 // pred_check_branch
        %129 = sbr.rel (%p126) target = $region28
      $region27: #{tpu_custom_call.1} parent=5 // pred_region
        %s130 = ssub.s32 %s12, 1
        // Predicated region
        $region29: #{tpu_custom_call.1} parent=27 // pred_check
          %p131 = pneg %p59
        $region30: #{tpu_custom_call.1} parent=27 // pred_check_branch
          %133 = sbr.rel (%p131) target = $region32
        $region31: #{tpu_custom_call.1} parent=27 // pred_region
          %134 = dma.done [#allocation3], 8192
        $region32: #{tpu_custom_call.1} parent=27 // pred_fallthru
          _
        %p135 = scmp.lt.s32.totalorder %s17, 1
        %s136 = scalar_select %p135, %s17, 1
        %s137 = smul.addr %s136, 8
        %s138 = scalar_lea.vmem %s0, %s137
        %p139 = pneg %p38
        %p140 = pneg %p35
        %p141 = pneg %p59
        %p142 = pneg %p56
        %p143 = pneg %p85
        %p144 = pneg %p82
        %s145 = sand.u32 %s72, 1
        %s146 = scalar_lea.sflag [#allocation4], %s145
        %s147 = sand.u32 %s72, 1
        %s148 = smul.addr %s147, 8
        %s149 = scalar_lea.vmem [#allocation5], %s148
        %p150 = scmp.lt.s32.totalorder %s17, 1
        %s151 = scalar_select %p150, %s17, 1
        %s152 = smul.addr %s151, 8
        %s153 = scalar_lea.vmem %s0, %s152
        %v154 = vld [vmem:[%s153] sm:$0xff]
        %v155 = vlaneseq
        %v156 = vand.u32 %v155, 127
        %v157 = vadd.s32 %v156, 128
        %v158 = vadd.s32 %v156, 256
        %v159 = vadd.s32 %v156, 384
        %160 = vset.pattern.permute.xlu0 0
        %161 = vperm.xlu0 %160, %v154
        %v162 = vpop.permute.xlu0 %161
        %vm163 = vcmp.eq.s32.totalorder %v156, %v162
        %vm164 = vcmp.eq.s32.totalorder %v157, %v162
        %vm165 = vcmp.eq.s32.totalorder %v158, %v162
        %vm166 = vcmp.eq.s32.totalorder %v159, %v162
        %v167 = vsel %vm163, 1, 0
        %v168 = vsel %vm164, 1, 0
        %v169 = vsel %vm165, 1, 0
        %v170 = vsel %vm166, 1, 0
        %v171 = vcvt.s32.f32 %v167
        %v172 = vcvt.s32.f32 %v168
        %v173 = vcvt.s32.f32 %v169
        %v174 = vcvt.s32.f32 %v170
        %v175 = vld [vmem:[#allocation2] sm:$0xff]
        %v176 = vld [vmem:[#allocation2 + $0x8] sm:$0xff]
        %v177 = vld [vmem:[#allocation2 + $0x10] sm:$0xff]
        %v178 = vld [vmem:[#allocation2 + $0x18] sm:$0xff]
        %v179 = vld [vmem:[#allocation2 + $0x20] sm:$0xff]
        %v180 = vld [vmem:[#allocation2 + $0x28] sm:$0xff]
        %v181 = vld [vmem:[#allocation2 + $0x30] sm:$0xff]
        %v182 = vld [vmem:[#allocation2 + $0x38] sm:$0xff]
        %v183 = vld [vmem:[#allocation2 + $0x40] sm:$0xff]
        %v184 = vld [vmem:[#allocation2 + $0x48] sm:$0xff]
        %v185 = vld [vmem:[#allocation2 + $0x50] sm:$0xff]
        %v186 = vld [vmem:[#allocation2 + $0x58] sm:$0xff]
        %v187 = vld [vmem:[#allocation2 + $0x60] sm:$0xff]
        %v188 = vld [vmem:[#allocation2 + $0x68] sm:$0xff]
        %v189 = vld [vmem:[#allocation2 + $0x70] sm:$0xff]
        %v190 = vld [vmem:[#allocation2 + $0x78] sm:$0xff]
        %v191 = vld [vmem:[#allocation2 + $0x80] sm:$0xff]
        %v192 = vld [vmem:[#allocation2 + $0x88] sm:$0xff]
        %v193 = vld [vmem:[#allocation2 + $0x90] sm:$0xff]
        %v194 = vld [vmem:[#allocation2 + $0x98] sm:$0xff]
        %v195 = vld [vmem:[#allocation2 + $0xa0] sm:$0xff]
        %v196 = vld [vmem:[#allocation2 + $0xa8] sm:$0xff]
        %v197 = vld [vmem:[#allocation2 + $0xb0] sm:$0xff]
        %v198 = vld [vmem:[#allocation2 + $0xb8] sm:$0xff]
        %v199 = vld [vmem:[#allocation2 + $0xc0] sm:$0xff]
        %v200 = vld [vmem:[#allocation2 + $0xc8] sm:$0xff]
        %v201 = vld [vmem:[#allocation2 + $0xd0] sm:$0xff]
        %v202 = vld [vmem:[#allocation2 + $0xd8] sm:$0xff]
        %v203 = vld [vmem:[#allocation2 + $0xe0] sm:$0xff]
        %v204 = vld [vmem:[#allocation2 + $0xe8] sm:$0xff]
        %v205 = vld [vmem:[#allocation2 + $0xf0] sm:$0xff]
        %v206 = vld [vmem:[#allocation2 + $0xf8] sm:$0xff]
        %v207 = vld [vmem:[#allocation2 + $0x100] sm:$0xff]
        %v208 = vld [vmem:[#allocation2 + $0x108] sm:$0xff]
        %v209 = vld [vmem:[#allocation2 + $0x110] sm:$0xff]
        %v210 = vld [vmem:[#allocation2 + $0x118] sm:$0xff]
        %v211 = vld [vmem:[#allocation2 + $0x120] sm:$0xff]
        %v212 = vld [vmem:[#allocation2 + $0x128] sm:$0xff]
        %v213 = vld [vmem:[#allocation2 + $0x130] sm:$0xff]
        %v214 = vld [vmem:[#allocation2 + $0x138] sm:$0xff]
        %v215 = vld [vmem:[#allocation2 + $0x140] sm:$0xff]
        %v216 = vld [vmem:[#allocation2 + $0x148] sm:$0xff]
        %v217 = vld [vmem:[#allocation2 + $0x150] sm:$0xff]
        %v218 = vld [vmem:[#allocation2 + $0x158] sm:$0xff]
        %v219 = vld [vmem:[#allocation2 + $0x160] sm:$0xff]
        %v220 = vld [vmem:[#allocation2 + $0x168] sm:$0xff]
        %v221 = vld [vmem:[#allocation2 + $0x170] sm:$0xff]
        %v222 = vld [vmem:[#allocation2 + $0x178] sm:$0xff]
        %v223 = vld [vmem:[#allocation2 + $0x180] sm:$0xff]
        %v224 = vld [vmem:[#allocation2 + $0x188] sm:$0xff]
        %v225 = vld [vmem:[#allocation2 + $0x190] sm:$0xff]
        %v226 = vld [vmem:[#allocation2 + $0x198] sm:$0xff]
        %v227 = vld [vmem:[#allocation2 + $0x1a0] sm:$0xff]
        %v228 = vld [vmem:[#allocation2 + $0x1a8] sm:$0xff]
        %v229 = vld [vmem:[#allocation2 + $0x1b0] sm:$0xff]
        %v230 = vld [vmem:[#allocation2 + $0x1b8] sm:$0xff]
        %v231 = vld [vmem:[#allocation2 + $0x1c0] sm:$0xff]
        %v232 = vld [vmem:[#allocation2 + $0x1c8] sm:$0xff]
        %v233 = vld [vmem:[#allocation2 + $0x1d0] sm:$0xff]
        %v234 = vld [vmem:[#allocation2 + $0x1d8] sm:$0xff]
        %v235 = vld [vmem:[#allocation2 + $0x1e0] sm:$0xff]
        %v236 = vld [vmem:[#allocation2 + $0x1e8] sm:$0xff]
        %v237 = vld [vmem:[#allocation2 + $0x1f0] sm:$0xff]
        %v238 = vld [vmem:[#allocation2 + $0x1f8] sm:$0xff]
        %239 = vmatprep.subr.mxu0 0.0
        %240 = vmatpush1.msra.mxu0 %v175
        %241 = vmatprep.subr.mxu0 0.0
        %242 = vmatpush1.msra.mxu0 %v176
        %243 = vmatprep.subr.mxu0 0.0
        %244 = vmatpush1.msra.mxu0 %v177
        %245 = vmatprep.subr.mxu0 0.0
        %246 = vmatpush1.msra.mxu0 %v178
        %247 = vmatprep.subr.mxu0 0.0
        %248 = vmatpush1.msra.mxu0 %v179
        %249 = vmatprep.subr.mxu0 0.0
        %250 = vmatpush1.msra.mxu0 %v180
        %251 = vmatprep.subr.mxu0 0.0
        %252 = vmatpush1.msra.mxu0 %v181
        %253 = vmatprep.subr.mxu0 0.0
        %254 = vmatpush1.msra.mxu0 %v182
        %255 = vmatprep.subr.mxu0 0.0
        %256 = vmatpush1.msra.mxu0 %v183
        %257 = vmatprep.subr.mxu0 0.0
        %258 = vmatpush1.msra.mxu0 %v184
        %259 = vmatprep.subr.mxu0 0.0
        %260 = vmatpush1.msra.mxu0 %v185
        %261 = vmatprep.subr.mxu0 0.0
        %262 = vmatpush1.msra.mxu0 %v186
        %263 = vmatprep.subr.mxu0 0.0
        %264 = vmatpush1.msra.mxu0 %v187
        %265 = vmatprep.subr.mxu0 0.0
        %266 = vmatpush1.msra.mxu0 %v188
        %267 = vmatprep.subr.mxu0 0.0
        %268 = vmatpush1.msra.mxu0 %v189
        %269 = vmatprep.subr.mxu0 0.0
        %270 = vmatpush1.msra.mxu0 %v190
        %271 = vmatprep.subr.mxu0 0.0
        %272 = vmatpush1.msra.mxu0 %v191
        %273 = vmatprep.subr.mxu0 0.0
        %274 = vmatpush1.msra.mxu0 %v192
        %275 = vmatprep.subr.mxu0 0.0
        %276 = vmatpush1.msra.mxu0 %v193
        %277 = vmatprep.subr.mxu0 0.0
        %278 = vmatpush1.msra.mxu0 %v194
        %279 = vmatprep.subr.mxu0 0.0
        %280 = vmatpush1.msra.mxu0 %v195
        %281 = vmatprep.subr.mxu0 0.0
        %282 = vmatpush1.msra.mxu0 %v196
        %283 = vmatprep.subr.mxu0 0.0
        %284 = vmatpush1.msra.mxu0 %v197
        %285 = vmatprep.subr.mxu0 0.0
        %286 = vmatpush1.msra.mxu0 %v198
        %287 = vmatprep.subr.mxu0 0.0
        %288 = vmatpush1.msra.mxu0 %v199
        %289 = vmatprep.subr.mxu0 0.0
        %290 = vmatpush1.msra.mxu0 %v200
        %291 = vmatprep.subr.mxu0 0.0
        %292 = vmatpush1.msra.mxu0 %v201
        %293 = vmatprep.subr.mxu0 0.0
        %294 = vmatpush1.msra.mxu0 %v202
        %295 = vmatprep.subr.mxu0 0.0
        %296 = vmatpush1.msra.mxu0 %v203
        %297 = vmatprep.subr.mxu0 0.0
        %298 = vmatpush1.msra.mxu0 %v204
        %299 = vmatprep.subr.mxu0 0.0
        %300 = vmatpush1.msra.mxu0 %v205
        %301 = vmatprep.subr.mxu0 0.0
        %302 = vmatpush1.msra.mxu0 %v206
        %303 = vmatprep.mubr.f32.mxu0 %v172
        %304 = vmatmul.mubr.f32.gmra.mrb[0].mxu0 %v171
        %v305 = vpop.f32.mrb[0].mxu0
        %v306 = vadd.f32 0.0, %v305
        %v307 = vpop.f32.mrb[0].mxu0
        %308 = vdwg.mxu0
        %309 = vmatprep.subr.mxu0 0.0
        %310 = vmatpush1.msra.mxu0 %v207
        %311 = vmatprep.subr.mxu0 0.0
        %312 = vmatpush1.msra.mxu0 %v208
        %313 = vmatprep.subr.mxu0 0.0
        %314 = vmatpush1.msra.mxu0 %v209
        %315 = vmatprep.subr.mxu0 0.0
        %316 = vmatpush1.msra.mxu0 %v210
        %317 = vmatprep.subr.mxu0 0.0
        %318 = vmatpush1.msra.mxu0 %v211
        %319 = vmatprep.subr.mxu0 0.0
        %320 = vmatpush1.msra.mxu0 %v212
        %321 = vmatprep.subr.mxu0 0.0
        %322 = vmatpush1.msra.mxu0 %v213
        %323 = vmatprep.subr.mxu0 0.0
        %324 = vmatpush1.msra.mxu0 %v214
        %325 = vmatprep.subr.mxu0 0.0
        %326 = vmatpush1.msra.mxu0 %v215
        %327 = vmatprep.subr.mxu0 0.0
        %328 = vmatpush1.msra.mxu0 %v216
        %329 = vmatprep.subr.mxu0 0.0
        %330 = vmatpush1.msra.mxu0 %v217
        %331 = vmatprep.subr.mxu0 0.0
        %332 = vmatpush1.msra.mxu0 %v218
        %333 = vmatprep.subr.mxu0 0.0
        %334 = vmatpush1.msra.mxu0 %v219
        %335 = vmatprep.subr.mxu0 0.0
        %336 = vmatpush1.msra.mxu0 %v220
        %337 = vmatprep.subr.mxu0 0.0
        %338 = vmatpush1.msra.mxu0 %v221
        %339 = vmatprep.subr.mxu0 0.0
        %340 = vmatpush1.msra.mxu0 %v222
        %341 = vmatprep.subr.mxu0 0.0
        %342 = vmatpush1.msra.mxu0 %v223
        %343 = vmatprep.subr.mxu0 0.0
        %344 = vmatpush1.msra.mxu0 %v224
        %345 = vmatprep.subr.mxu0 0.0
        %346 = vmatpush1.msra.mxu0 %v225
        %347 = vmatprep.subr.mxu0 0.0
        %348 = vmatpush1.msra.mxu0 %v226
        %349 = vmatprep.subr.mxu0 0.0
        %350 = vmatpush1.msra.mxu0 %v227
        %351 = vmatprep.subr.mxu0 0.0
        %352 = vmatpush1.msra.mxu0 %v228
        %353 = vmatprep.subr.mxu0 0.0
        %354 = vmatpush1.msra.mxu0 %v229
        %355 = vmatprep.subr.mxu0 0.0
        %356 = vmatpush1.msra.mxu0 %v230
        %357 = vmatprep.subr.mxu0 0.0
        %358 = vmatpush1.msra.mxu0 %v231
        %359 = vmatprep.subr.mxu0 0.0
        %360 = vmatpush1.msra.mxu0 %v232
        %361 = vmatprep.subr.mxu0 0.0
        %362 = vmatpush1.msra.mxu0 %v233
        %363 = vmatprep.subr.mxu0 0.0
        %364 = vmatpush1.msra.mxu0 %v234
        %365 = vmatprep.subr.mxu0 0.0
        %366 = vmatpush1.msra.mxu0 %v235
        %367 = vmatprep.subr.mxu0 0.0
        %368 = vmatpush1.msra.mxu0 %v236
        %369 = vmatprep.subr.mxu0 0.0
        %370 = vmatpush1.msra.mxu0 %v237
        %371 = vmatprep.subr.mxu0 0.0
        %372 = vmatpush1.msra.mxu0 %v238
        %373 = vmatprep.mubr.f32.mxu0 %v174
        %374 = vmatmul.mubr.f32.gmra.mrb[0].mxu0 %v173
        %v375 = vpop.f32.mrb[0].mxu0
        %v376 = vadd.f32 %v306, %v375
        %v377 = vpop.f32.mrb[0].mxu0
        %378 = vdwg.mxu0
        %379 = vst [vmem:[%s149] sm:$0xff] %v376
        %s380 = sand.u32 %s72, 1
        %s381 = scalar_lea.sflag [#allocation4], %s380
        %s382 = sand.u32 %s72, 1
        %s383 = smul.addr %s382, 8
        %s384 = scalar_lea.vmem [#allocation5], %s383
        // Predicated region
        $region33: #{tpu_custom_call.1} parent=27 // pred_check
          %p385 = pneg %p82
        $region34: #{tpu_custom_call.1} parent=27 // pred_check_branch
          %387 = sbr.rel (%p385) target = $region36
        $region35: #{tpu_custom_call.1} parent=27 // pred_region
          %s389 = ssub.s32 128, 128
          %390 = vsyncadd %s381, %s389
          %s391 = smul.addr %s17, 128
          %s392 = scalar_lea.hbm %s2, %s391
          %s394 = sshll.u32 %s384, 4
          %s395 = int_to_ptr.vmem [resolvable:$true] %s394
          %397 = dma.vmem_to_hbm [thread:$0]  %s395, 128, %s392, %s381
        $region36: #{tpu_custom_call.1} parent=27 // pred_fallthru
          _
      $region28: #{tpu_custom_call.1} parent=5 // pred_fallthru
        _
      %p398 = scmp.le.s32.totalorder 2, %s12
      // Predicated region
      $region37: #{tpu_custom_call.1} parent=5 // pred_check
        %p399 = pneg %p398
      $region38: #{tpu_custom_call.1} parent=5 // pred_check_branch
        %401 = sbr.rel (%p399) target = $region40
      $region39: #{tpu_custom_call.1} parent=5 // pred_region
        %s402 = ssub.s32 %s12, 2
        // Predicated region
        $region41: #{tpu_custom_call.1} parent=39 // pred_check
          %p403 = pneg %p88
        $region42: #{tpu_custom_call.1} parent=39 // pred_check_branch
          %405 = sbr.rel (%p403) target = $region44
        $region43: #{tpu_custom_call.1} parent=39 // pred_region
          %s406 = sand.u32 %s73, 1
          %s407 = scalar_lea.sflag [#allocation4], %s406
          %s408 = sand.u32 %s73, 1
          %s409 = smul.addr %s408, 8
          %s410 = scalar_lea.vmem [#allocation5], %s409
          %411 = dma.done %s407, 128
        $region44: #{tpu_custom_call.1} parent=39 // pred_fallthru
          _
      $region40: #{tpu_custom_call.1} parent=5 // pred_fallthru
        _
    $region6: #{tpu_custom_call.1} parent=1 // loop_footer
      %s16 = sadd.s32 1, %s12
    $region7: #{tpu_custom_call.1} parent=1 // loop_footer_branch
      %11 = sbr.rel target = $region3
    $region8: #{tpu_custom_call.1} parent=1 // loop_exit
      _
    %412 = vsyncpa [#allocation3], 1
    %s413 = scalar_lea.sflag [#allocation3], 1
    %414 = vsyncpa %s413, 1
    %415 = vsyncpa [#allocation4], 1
    %s416 = scalar_lea.sflag [#allocation4], 1
    %417 = vsyncpa %s416, 1

</llo_original>
